<compile_context>
chip_gen: v6e
topology: v6e:2x2x1
jax: 0.10.0
libtpu: 0.0.40
codegen_flags: <defaults>
</compile_context>

<pallas_src>
import functools
import math

import jax
import jax.numpy as jnp
from jax.experimental import pallas as pl
from jax.experimental.pallas import tpu as pltpu


def _round_up(x, m):
    return -(-x // m) * m


def noq_attention_kernel(k_ref, qx_ref, wk_ref, bk_ref, wp_ref, bp_ref,
                         out_ref, score_ref, *, approx_recip):
    # k_ref:     (Bt, Lk, E)     block of Bt batch elements (matmul dtype)
    # qx_ref:    (Lq, H)         pre-projected query (f32, batch-invariant)
    # wk_ref:    (E, H)          bk_ref: (1, H) f32
    # wp_ref:    (H, Opad)       zero-padded to lane-dense width; bp_ref: (1, Opad) f32
    # out_ref:   (Bt*Lq, Opad)   lane-dense slab
    # score_ref: (Bt*Lq, Lkpad)  lane-dense slab (zero-padded beyond Lk)
    Bt, Lk, E = k_ref.shape
    Lq, H = qx_ref.shape
    Lkpad = score_ref.shape[-1]
    mdt = wk_ref.dtype                     # matmul operand dtype (f32 / bf16)

    # ---- key projection: one (Bt*Lk, E) @ (E, H) MXU matmul, f32 accumulation
    k2 = k_ref[...].reshape(Bt * Lk, E)
    kx2 = jnp.dot(k2, wk_ref[...], preferred_element_type=jnp.float32)
    kx2 = kx2 + bk_ref[...]                                   # (Bt*Lk, H) f32
    kx = kx2.reshape(Bt, Lk, H)

    if Lq == 1:
        # ---- Lq==1 fast path: VPU/lane-reduction, no degenerate MXU calls ----
        qrow = qx_ref[...].reshape(1, 1, H)                   # f32
        s = jnp.sum(kx * qrow, axis=-1)                       # (Bt, Lk) f32
        s = s - jnp.max(s, axis=-1, keepdims=True)
        e = jnp.exp(s)
        denom = jnp.sum(e, axis=-1, keepdims=True)
        if approx_recip:
            p = e * pl.reciprocal(denom, approx=True)
        else:
            p = e / denom                                     # exact softmax
        # attention-weighted sum over keys (sublane reduction), f32
        o = jnp.sum(p[..., None] * kx, axis=1)                # (Bt, H) f32
        # output projection (lane-dense N = Opad)
        o2 = jnp.dot(o.astype(mdt), wp_ref[...],
                     preferred_element_type=jnp.float32) + bp_ref[...]
        out_ref[...] = o2.astype(out_ref.dtype)               # (Bt, Opad)
        p2 = p                                                # (Bt, Lk)
    else:
        # ---- general Lq>1 path: batched MXU contractions over H ----
        kx_m = kx.astype(mdt)                                 # cast once, reused
        qxb = jnp.broadcast_to(qx_ref[...].astype(mdt)[None], (Bt, Lq, H))
        s = jnp.einsum('bqh,bkh->bqk', qxb, kx_m,
                       preferred_element_type=jnp.float32)    # (Bt, Lq, Lk)
        s = s - jnp.max(s, axis=-1, keepdims=True)
        e = jnp.exp(s)
        denom = jnp.sum(e, axis=-1, keepdims=True)
        if approx_recip:
            p = e * pl.reciprocal(denom, approx=True)
        else:
            p = e / denom
        o = jnp.einsum('bqk,bkh->bqh', p.astype(mdt), kx_m,
                       preferred_element_type=jnp.float32)    # (Bt, Lq, H)
        o2 = jnp.dot(o.reshape(Bt * Lq, H).astype(mdt), wp_ref[...],
                     preferred_element_type=jnp.float32) + bp_ref[...]
        out_ref[...] = o2.astype(out_ref.dtype)               # (Bt*Lq, Opad)
        p2 = p.reshape(Bt * Lq, Lk)

    # ---- lane-dense score store (zero-pad beyond Lk) ----
    if Lkpad > Lk:
        rows = p2.shape[0]
        p2 = jnp.concatenate(
            [p2, jnp.zeros((rows, Lkpad - Lk), p2.dtype)], axis=-1)
    score_ref[...] = p2.astype(score_ref.dtype)


def no_query_attention(k, q, wk, bk, wq, bq, wp, bp, *,
                       block_b=512, matmul_dtype=None,
                       score_dtype=jnp.float32, approx_recip=False,
                       single_buffer_consts=True):
    """k: (B, Lk, E), q: (Lq, E). Returns (output (B, Lq, O), score (B, Lq, Lk))."""
    B, Lk, E = k.shape
    Lq = q.shape[0]
    H = wk.shape[1]
    O = wp.shape[1]
    out_dtype = k.dtype
    mdt = jnp.dtype(out_dtype if matmul_dtype is None else matmul_dtype)

    # lane-dense output / score widths
    Opad = _round_up(O, 128)
    Lkpad = _round_up(Lk, 128)

    # Hoist the batch-invariant query projection out of the kernel (f32).
    qx = (jnp.dot(q.astype(jnp.float32), wq.astype(jnp.float32),
                  preferred_element_type=jnp.float32)
          + bq.astype(jnp.float32))                            # (Lq, H)

    # ---- generation-aware VMEM budget -> batch block size ----
    msz = jnp.dtype(mdt).itemsize
    osz = jnp.dtype(out_dtype).itemsize
    ssz = jnp.dtype(score_dtype).itemsize
    # per-batch-element bytes: double-buffered pipeline IO + f32 intermediates
    per_b = (2 * (Lk * E * msz + Lq * Opad * osz + Lq * Lkpad * ssz)
             + 2 * Lk * H * 4             # kx (+ possible mdt copy)
             + 2 * Lq * Lk * 4            # scores / probs
             + Lq * H * 4 + Lq * Opad * 4)
    w_mult = 1 if single_buffer_consts else 2
    const_bytes = w_mult * ((E * H + H * Opad) * msz + (H + Opad + Lq * H) * 4)

    try:
        cap = int(pltpu.get_tpu_info().vmem_capacity_bytes)
    except Exception:
        cap = 64 << 20                     # conservative (v7x physical VMEM)
    budget = min(cap * 3 // 4, 96 << 20)   # ~48 MiB on v7x, up to 96 MiB on v5e/v6e

    avail = budget - const_bytes - (4 << 20)
    bt_cap = max(1, avail // max(per_b, 1))
    Bt = max(1, int(min(block_b, B, bt_cap)))

    align = 8 // math.gcd(Lq, 8)           # keep (Bt*Lq) % 8 == 0 when tiled
    if Bt >= B:
        # One block would cover the whole batch; split in two (sublane-aligned)
        # so the "parallel" grid axis can use both v7x TensorCores.
        half = _round_up(-(-B // 2), align)
        Bt = half if half < B else B
    else:
        Bt = _round_up(Bt, align)
    n_blocks = -(-B // Bt)
    Bp = n_blocks * Bt

    kp = k
    if Bp != B:
        kp = jnp.pad(kp, ((0, Bp - B), (0, 0), (0, 0)))
    kp = kp.astype(mdt)

    wk_m = wk.astype(mdt)
    wp_m = wp.astype(mdt)
    if Opad > O:
        wp_m = jnp.pad(wp_m, ((0, 0), (0, Opad - O)))
        bp_p = jnp.pad(bp.astype(jnp.float32).reshape(1, O),
                       ((0, 0), (0, Opad - O)))
    else:
        bp_p = bp.astype(jnp.float32).reshape(1, O)
    bk2 = bk.astype(jnp.float32).reshape(1, H)

    need = Bt * per_b + const_bytes + (4 << 20)
    vmem_limit = int(min(budget, max(need, 16 << 20)))

    out_shape = (
        jax.ShapeDtypeStruct((Bp * Lq, Opad), out_dtype),
        jax.ShapeDtypeStruct((Bp * Lq, Lkpad), score_dtype),
    )
    out_specs = (
        pl.BlockSpec((Bt * Lq, Opad), lambda b: (b, 0)),
        pl.BlockSpec((Bt * Lq, Lkpad), lambda b: (b, 0)),
    )

    has_buffered = hasattr(pl, "Buffered")

    def _const_spec(shape, single_buffer):
        if single_buffer and has_buffered:
            return pl.BlockSpec(shape, lambda b: (0,) * len(shape),
                                pipeline_mode=pl.Buffered(1))
        return pl.BlockSpec(shape, lambda b: (0,) * len(shape))

    kernel = functools.partial(noq_attention_kernel, approx_recip=approx_recip)

    def _run(single_buffer):
        in_specs = [
            pl.BlockSpec((Bt, Lk, E), lambda b: (b, 0, 0)),   # k block
            _const_spec((Lq, H), single_buffer),              # qx (grid-invariant)
            _const_spec((E, H), single_buffer),               # wk
            _const_spec((1, H), single_buffer),               # bk
            _const_spec((H, Opad), single_buffer),            # wp (padded)
            _const_spec((1, Opad), single_buffer),            # bp (padded)
        ]
        fn = pl.pallas_call(
            kernel,
            out_shape=out_shape,
            grid_spec=pltpu.PrefetchScalarGridSpec(
                num_scalar_prefetch=0,
                grid=(n_blocks,),
                in_specs=in_specs,
                out_specs=out_specs,
            ),
            compiler_params=pltpu.CompilerParams(
                dimension_semantics=("parallel",),
                vmem_limit_bytes=vmem_limit,
            ),
        )
        return fn(kp, qx, wk_m, bk2, wp_m, bp_p)

    if single_buffer_consts and has_buffered:
        try:
            out2, score2 = _run(True)
        except Exception:
            # Fallback: retry with default double-buffering (perf-only feature).
            out2, score2 = _run(False)
    else:
        out2, score2 = _run(False)

    out = out2.reshape(Bp, Lq, Opad)[:B, :, :O]
    score = score2.reshape(Bp, Lq, Lkpad)[:B, :, :Lk]
    return out, score


def reference(k, q, wk, bk, wq, bq, wp, bp):
    # plain-JAX mirror of the PyTorch forward (n_head=1, dot_product, dropout=0)
    B = k.shape[0]
    qx = q[None].repeat(B, axis=0) @ wq + bq            # (B, Lq, H)
    kx = k @ wk + bk                                     # (B, Lk, H)
    score = jnp.einsum('bqh,bkh->bqk', qx, kx)
    score = jax.nn.softmax(score, axis=-1)
    out = jnp.einsum('bqk,bkh->bqh', score, kx)
    out = out @ wp + bp
    return out, score


if __name__ == "__main__":
    # Small shapes consistent with the module defaults.
    B, Lk, E = 2, 8, 32
    n_head = 1
    H = E // n_head        # hidden_dim default
    O = E                  # out_dim default
    Lq = 1                 # q_len default

    key = jax.random.PRNGKey(0)
    k1, k2, k3, k4, k5, k6, k7, k8 = jax.random.split(key, 8)

    stdv_lin = 1.0 / math.sqrt(E)
    stdv_q = 1.0 / math.sqrt(E)
    k_in = jax.random.normal(k1, (B, Lk, E), dtype=jnp.float32)
    q_param = jax.random.uniform(k2, (Lq, E), minval=-stdv_q, maxval=stdv_q)
    wk = jax.random.uniform(k3, (E, H), minval=-stdv_lin, maxval=stdv_lin)
    bk = jax.random.uniform(k4, (H,), minval=-stdv_lin, maxval=stdv_lin)
    wq = jax.random.uniform(k5, (E, H), minval=-stdv_lin, maxval=stdv_lin)
    bq = jax.random.uniform(k6, (H,), minval=-stdv_lin, maxval=stdv_lin)
    stdv_p = 1.0 / math.sqrt(n_head * H)
    wp = jax.random.uniform(k7, (n_head * H, O), minval=-stdv_p, maxval=stdv_p)
    bp = jax.random.uniform(k8, (O,), minval=-stdv_p, maxval=stdv_p)

    out_ref, score_ref = reference(k_in, q_param, wk, bk, wq, bq, wp, bp)

    # f32 path, exact softmax divide (default)
    out, score = no_query_attention(k_in, q_param, wk, bk, wq, bq, wp, bp)
    out, score = jax.block_until_ready((out, score))
    assert out.shape == (B, Lq, O) and score.shape == (B, Lq, Lk)
    assert jnp.allclose(out, out_ref, atol=2e-3, rtol=2e-3)
    assert jnp.allclose(score, score_ref, atol=2e-3, rtol=2e-3)

    # bf16 matmul path (MXU-native; f32 accumulation / f32 softmax)
    out_bf, score_bf = no_query_attention(k_in, q_param, wk, bk, wq, bq, wp, bp,
                                          matmul_dtype=jnp.bfloat16)
    out_bf, score_bf = jax.block_until_ready((out_bf, score_bf))
    assert jnp.allclose(out_bf, out_ref, atol=6e-2, rtol=6e-2)
    assert jnp.allclose(score_bf, score_ref, atol=6e-2, rtol=6e-2)

    # larger batch: exercises multi-block grid, sublane alignment and padding
    B2 = 20
    k_in2 = jax.random.normal(jax.random.PRNGKey(1), (B2, Lk, E),
                              dtype=jnp.float32)
    out_ref2, score_ref2 = reference(k_in2, q_param, wk, bk, wq, bq, wp, bp)
    out2, score2 = no_query_attention(k_in2, q_param, wk, bk, wq, bq, wp, bp)
    out2, score2 = jax.block_until_ready((out2, score2))
    assert out2.shape == (B2, Lq, O) and score2.shape == (B2, Lq, Lk)
    assert jnp.allclose(out2, out_ref2, atol=2e-3, rtol=2e-3)
    assert jnp.allclose(score2, score_ref2, atol=2e-3, rtol=2e-3)

    print("KERNEL_OK")
</pallas_src>

<mosaic_0001>
module attributes {stable_mosaic.version = 11 : i64} {
  func.func @noq_attention_kernel(%arg0: i32, %arg1: memref<2x8x32xf32, #tpu.memory_space<vmem>>, %arg2: memref<1x32xf32, #tpu.memory_space<vmem>>, %arg3: memref<32x32xf32, #tpu.memory_space<vmem>>, %arg4: memref<1x32xf32, #tpu.memory_space<vmem>>, %arg5: memref<32x128xf32, #tpu.memory_space<vmem>>, %arg6: memref<1x128xf32, #tpu.memory_space<vmem>>, %arg7: memref<2x128xf32, #tpu.memory_space<vmem>>, %arg8: memref<2x128xf32, #tpu.memory_space<vmem>>) attributes {dimension_semantics = [#tpu.dimension_semantics<parallel>], iteration_bounds = array<i64: 1>, scalar_prefetch = 0 : i64, scratch_operands = 0 : i64, tpu.core_type = #tpu.core_type<tc>, window_params = [{transform_indices = @transform_0, window_bounds = array<i64: 2, 8, 32>}, {pipeline_mode = #tpu.pipeline_mode<synchronous>, transform_indices = @transform_1, window_bounds = array<i64: 1, 32>}, {pipeline_mode = #tpu.pipeline_mode<synchronous>, transform_indices = @transform_2, window_bounds = array<i64: 32, 32>}, {pipeline_mode = #tpu.pipeline_mode<synchronous>, transform_indices = @transform_3, window_bounds = array<i64: 1, 32>}, {pipeline_mode = #tpu.pipeline_mode<synchronous>, transform_indices = @transform_4, window_bounds = array<i64: 32, 128>}, {pipeline_mode = #tpu.pipeline_mode<synchronous>, transform_indices = @transform_5, window_bounds = array<i64: 1, 128>}, {transform_indices = @transform_6, window_bounds = array<i64: 2, 128>}, {transform_indices = @transform_7, window_bounds = array<i64: 2, 128>}]} {
    %c0 = arith.constant 0 : index
    %c0_0 = arith.constant 0 : index
    %c0_1 = arith.constant 0 : index
    %0 = vector.load %arg1[%c0, %c0_0, %c0_1] : memref<2x8x32xf32, #tpu.memory_space<vmem>>, vector<2x8x32xf32>
    %1 = vector.shape_cast %0 : vector<2x8x32xf32> to vector<16x32xf32>
    %c0_2 = arith.constant 0 : index
    %c0_3 = arith.constant 0 : index
    %2 = vector.load %arg3[%c0_2, %c0_3] : memref<32x32xf32, #tpu.memory_space<vmem>>, vector<32x32xf32>
    %cst = arith.constant dense<0.000000e+00> : vector<16x32xf32>
    %3 = tpu.matmul %1, %2, %cst {dimension_numbers = #tpu.dot_dimension_numbers<[1], [0], [0], [1], [0, 0, 1, 1], [], []>} : vector<16x32xf32>, vector<32x32xf32>, vector<16x32xf32> -> vector<16x32xf32>
    %c0_4 = arith.constant 0 : index
    %c0_5 = arith.constant 0 : index
    %4 = vector.load %arg4[%c0_4, %c0_5] : memref<1x32xf32, #tpu.memory_space<vmem>>, vector<1x32xf32>
    %5 = vector.broadcast %4 : vector<1x32xf32> to vector<16x32xf32>
    %6 = arith.addf %3, %5 : vector<16x32xf32>
    %7 = vector.shape_cast %6 : vector<16x32xf32> to vector<2x8x32xf32>
    %c0_6 = arith.constant 0 : index
    %c0_7 = arith.constant 0 : index
    %8 = vector.load %arg2[%c0_6, %c0_7] : memref<1x32xf32, #tpu.memory_space<vmem>>, vector<1x32xf32>
    %9 = vector.shape_cast %8 : vector<1x32xf32> to vector<1x1x32xf32>
    %10 = vector.broadcast %9 : vector<1x1x32xf32> to vector<2x8x32xf32>
    %11 = arith.mulf %7, %10 : vector<2x8x32xf32>
    %cst_8 = arith.constant dense<0.000000e+00> : vector<2x8xf32>
    %12 = vector.multi_reduction <add>, %11, %cst_8 [2] : vector<2x8x32xf32> to vector<2x8xf32>
    %cst_9 = arith.constant dense<0xFF800000> : vector<2xf32>
    %13 = vector.multi_reduction <maximumf>, %12, %cst_9 [1] : vector<2x8xf32> to vector<2xf32>
    %14 = vector.shape_cast %13 : vector<2xf32> to vector<2x1xf32>
    %15 = vector.broadcast %14 : vector<2x1xf32> to vector<2x8xf32>
    %16 = arith.subf %12, %15 : vector<2x8xf32>
    %17 = math.exp %16 : vector<2x8xf32>
    %cst_10 = arith.constant dense<0.000000e+00> : vector<2xf32>
    %18 = vector.multi_reduction <add>, %17, %cst_10 [1] : vector<2x8xf32> to vector<2xf32>
    %19 = vector.shape_cast %18 : vector<2xf32> to vector<2x1xf32>
    %20 = vector.broadcast %19 : vector<2x1xf32> to vector<2x8xf32>
    %21 = arith.divf %17, %20 : vector<2x8xf32>
    %22 = vector.shape_cast %21 : vector<2x8xf32> to vector<2x8x1xf32>
    %23 = vector.broadcast %22 : vector<2x8x1xf32> to vector<2x8x32xf32>
    %24 = arith.mulf %23, %7 : vector<2x8x32xf32>
    %cst_11 = arith.constant dense<0.000000e+00> : vector<2x32xf32>
    %25 = vector.multi_reduction <add>, %24, %cst_11 [1] : vector<2x8x32xf32> to vector<2x32xf32>
    %c0_12 = arith.constant 0 : index
    %c0_13 = arith.constant 0 : index
    %26 = vector.load %arg5[%c0_12, %c0_13] : memref<32x128xf32, #tpu.memory_space<vmem>>, vector<32x128xf32>
    %cst_14 = arith.constant dense<0.000000e+00> : vector<2x128xf32>
    %27 = tpu.matmul %25, %26, %cst_14 {dimension_numbers = #tpu.dot_dimension_numbers<[1], [0], [0], [1], [0, 0, 1, 1], [], []>} : vector<2x32xf32>, vector<32x128xf32>, vector<2x128xf32> -> vector<2x128xf32>
    %c0_15 = arith.constant 0 : index
    %c0_16 = arith.constant 0 : index
    %28 = vector.load %arg6[%c0_15, %c0_16] : memref<1x128xf32, #tpu.memory_space<vmem>>, vector<1x128xf32>
    %29 = vector.broadcast %28 : vector<1x128xf32> to vector<2x128xf32>
    %30 = arith.addf %27, %29 : vector<2x128xf32>
    %c0_17 = arith.constant 0 : index
    %c0_18 = arith.constant 0 : index
    %31 = vector.load %arg7[%c0_17, %c0_18] : memref<2x128xf32, #tpu.memory_space<vmem>>, vector<2x128xf32>
    tpu.vector_store %arg7[%c0_17, %c0_18], %30 {strides = array<i32>} : memref<2x128xf32, #tpu.memory_space<vmem>>, vector<2x128xf32>,
    %cst_19 = arith.constant 0.000000e+00 : f32
    %32 = vector.broadcast %cst_19 : f32 to vector<2x120xf32>
    %33 = tpu.concatenate %21, %32 in 1 : vector<2x8xf32>, vector<2x120xf32> -> vector<2x128xf32>
    %c0_20 = arith.constant 0 : index
    %c0_21 = arith.constant 0 : index
    %34 = vector.load %arg8[%c0_20, %c0_21] : memref<2x128xf32, #tpu.memory_space<vmem>>, vector<2x128xf32>
    tpu.vector_store %arg8[%c0_20, %c0_21], %33 {strides = array<i32>} : memref<2x128xf32, #tpu.memory_space<vmem>>, vector<2x128xf32>,
    return
  }
  func.func @transform_0(%arg0: i32) -> (i32, i32, i32) {
    %c0_i32 = arith.constant 0 : i32
    %c0_i32_0 = arith.constant 0 : i32
    %c0_i32_1 = arith.constant 0 : i32
    return %arg0, %c0_i32, %c0_i32_0 : i32, i32, i32
  }
  func.func @transform_1(%arg0: i32) -> (i32, i32) {
    %c0_i32 = arith.constant 0 : i32
    %c0_i32_0 = arith.constant 0 : i32
    %c0_i32_1 = arith.constant 0 : i32
    return %c0_i32, %c0_i32_0 : i32, i32
  }
  func.func @transform_2(%arg0: i32) -> (i32, i32) {
    %c0_i32 = arith.constant 0 : i32
    %c0_i32_0 = arith.constant 0 : i32
    %c0_i32_1 = arith.constant 0 : i32
    return %c0_i32, %c0_i32_0 : i32, i32
  }
  func.func @transform_3(%arg0: i32) -> (i32, i32) {
    %c0_i32 = arith.constant 0 : i32
    %c0_i32_0 = arith.constant 0 : i32
    %c0_i32_1 = arith.constant 0 : i32
    return %c0_i32, %c0_i32_0 : i32, i32
  }
  func.func @transform_4(%arg0: i32) -> (i32, i32) {
    %c0_i32 = arith.constant 0 : i32
    %c0_i32_0 = arith.constant 0 : i32
    %c0_i32_1 = arith.constant 0 : i32
    return %c0_i32, %c0_i32_0 : i32, i32
  }
  func.func @transform_5(%arg0: i32) -> (i32, i32) {
    %c0_i32 = arith.constant 0 : i32
    %c0_i32_0 = arith.constant 0 : i32
    %c0_i32_1 = arith.constant 0 : i32
    return %c0_i32, %c0_i32_0 : i32, i32
  }
  func.func @transform_6(%arg0: i32) -> (i32, i32) {
    %c0_i32 = arith.constant 0 : i32
    %c0_i32_0 = arith.constant 0 : i32
    return %arg0, %c0_i32 : i32, i32
  }
  func.func @transform_7(%arg0: i32) -> (i32, i32) {
    %c0_i32 = arith.constant 0 : i32
    %c0_i32_0 = arith.constant 0 : i32
    return %arg0, %c0_i32 : i32, i32
  }
}

module attributes {stable_mosaic.version = 11 : i64} {
  func.func @noq_attention_kernel(%arg0: i32, %arg1: memref<2x8x32xf32, #tpu.memory_space<vmem>>, %arg2: memref<1x32xf32, #tpu.memory_space<vmem>>, %arg3: memref<32x32xf32, #tpu.memory_space<vmem>>, %arg4: memref<1x32xf32, #tpu.memory_space<vmem>>, %arg5: memref<32x128xf32, #tpu.memory_space<vmem>>, %arg6: memref<1x128xf32, #tpu.memory_space<vmem>>, %arg7: memref<2x128xf32, #tpu.memory_space<vmem>>, %arg8: memref<2x128xf32, #tpu.memory_space<vmem>>) attributes {dimension_semantics = [#tpu.dimension_semantics<parallel>], iteration_bounds = array<i64: 1>, scalar_prefetch = 0 : i64, scratch_operands = 0 : i64, tpu.core_type = #tpu.core_type<tc>, window_params = [{transform_indices = @transform_0, window_bounds = array<i64: 2, 8, 32>}, {pipeline_mode = #tpu.pipeline_mode<synchronous>, transform_indices = @transform_1, window_bounds = array<i64: 1, 32>}, {pipeline_mode = #tpu.pipeline_mode<synchronous>, transform_indices = @transform_2, window_bounds = array<i64: 32, 32>}, {pipeline_mode = #tpu.pipeline_mode<synchronous>, transform_indices = @transform_3, window_bounds = array<i64: 1, 32>}, {pipeline_mode = #tpu.pipeline_mode<synchronous>, transform_indices = @transform_4, window_bounds = array<i64: 32, 128>}, {pipeline_mode = #tpu.pipeline_mode<synchronous>, transform_indices = @transform_5, window_bounds = array<i64: 1, 128>}, {transform_indices = @transform_6, window_bounds = array<i64: 2, 128>}, {transform_indices = @transform_7, window_bounds = array<i64: 2, 128>}]} {
    %c0 = arith.constant 0 : index
    %c0_0 = arith.constant 0 : index
    %c0_1 = arith.constant 0 : index
    %0 = vector.load %arg1[%c0, %c0_0, %c0_1] : memref<2x8x32xf32, #tpu.memory_space<vmem>>, vector<2x8x32xf32>
    %1 = vector.shape_cast %0 : vector<2x8x32xf32> to vector<16x32xf32>
    %c0_2 = arith.constant 0 : index
    %c0_3 = arith.constant 0 : index
    %2 = vector.load %arg3[%c0_2, %c0_3] : memref<32x32xf32, #tpu.memory_space<vmem>>, vector<32x32xf32>
    %cst = arith.constant dense<0.000000e+00> : vector<16x32xf32>
    %3 = tpu.matmul %1, %2, %cst {dimension_numbers = #tpu.dot_dimension_numbers<[1], [0], [0], [1], [0, 0, 1, 1], [], []>} : vector<16x32xf32>, vector<32x32xf32>, vector<16x32xf32> -> vector<16x32xf32>
    %c0_4 = arith.constant 0 : index
    %c0_5 = arith.constant 0 : index
    %4 = vector.load %arg4[%c0_4, %c0_5] : memref<1x32xf32, #tpu.memory_space<vmem>>, vector<1x32xf32>
    %5 = vector.broadcast %4 : vector<1x32xf32> to vector<16x32xf32>
    %6 = arith.addf %3, %5 : vector<16x32xf32>
    %7 = vector.shape_cast %6 : vector<16x32xf32> to vector<2x8x32xf32>
    %c0_6 = arith.constant 0 : index
    %c0_7 = arith.constant 0 : index
    %8 = vector.load %arg2[%c0_6, %c0_7] : memref<1x32xf32, #tpu.memory_space<vmem>>, vector<1x32xf32>
    %9 = vector.shape_cast %8 : vector<1x32xf32> to vector<1x1x32xf32>
    %10 = vector.broadcast %9 : vector<1x1x32xf32> to vector<2x8x32xf32>
    %11 = arith.mulf %7, %10 : vector<2x8x32xf32>
    %cst_8 = arith.constant dense<0.000000e+00> : vector<2x8xf32>
    %12 = vector.multi_reduction <add>, %11, %cst_8 [2] : vector<2x8x32xf32> to vector<2x8xf32>
    %cst_9 = arith.constant dense<0xFF800000> : vector<2xf32>
    %13 = vector.multi_reduction <maximumf>, %12, %cst_9 [1] : vector<2x8xf32> to vector<2xf32>
    %14 = vector.shape_cast %13 : vector<2xf32> to vector<2x1xf32>
    %15 = vector.broadcast %14 : vector<2x1xf32> to vector<2x8xf32>
    %16 = arith.subf %12, %15 : vector<2x8xf32>
    %17 = math.exp %16 : vector<2x8xf32>
    %cst_10 = arith.constant dense<0.000000e+00> : vector<2xf32>
    %18 = vector.multi_reduction <add>, %17, %cst_10 [1] : vector<2x8xf32> to vector<2xf32>
    %19 = vector.shape_cast %18 : vector<2xf32> to vector<2x1xf32>
    %20 = vector.broadcast %19 : vector<2x1xf32> to vector<2x8xf32>
    %21 = arith.divf %17, %20 : vector<2x8xf32>
    %22 = vector.shape_cast %21 : vector<2x8xf32> to vector<2x8x1xf32>
    %23 = vector.broadcast %22 : vector<2x8x1xf32> to vector<2x8x32xf32>
    %24 = arith.mulf %23, %7 : vector<2x8x32xf32>
    %cst_11 = arith.constant dense<0.000000e+00> : vector<2x32xf32>
    %25 = vector.multi_reduction <add>, %24, %cst_11 [1] : vector<2x8x32xf32> to vector<2x32xf32>
    %c0_12 = arith.constant 0 : index
    %c0_13 = arith.constant 0 : index
    %26 = vector.load %arg5[%c0_12, %c0_13] : memref<32x128xf32, #tpu.memory_space<vmem>>, vector<32x128xf32>
    %cst_14 = arith.constant dense<0.000000e+00> : vector<2x128xf32>
    %27 = tpu.matmul %25, %26, %cst_14 {dimension_numbers = #tpu.dot_dimension_numbers<[1], [0], [0], [1], [0, 0, 1, 1], [], []>} : vector<2x32xf32>, vector<32x128xf32>, vector<2x128xf32> -> vector<2x128xf32>
    %c0_15 = arith.constant 0 : index
    %c0_16 = arith.constant 0 : index
    %28 = vector.load %arg6[%c0_15, %c0_16] : memref<1x128xf32, #tpu.memory_space<vmem>>, vector<1x128xf32>
    %29 = vector.broadcast %28 : vector<1x128xf32> to vector<2x128xf32>
    %30 = arith.addf %27, %29 : vector<2x128xf32>
    %c0_17 = arith.constant 0 : index
    %c0_18 = arith.constant 0 : index
    %31 = vector.load %arg7[%c0_17, %c0_18] : memref<2x128xf32, #tpu.memory_space<vmem>>, vector<2x128xf32>
    tpu.vector_store %arg7[%c0_17, %c0_18], %30 {strides = array<i32>} : memref<2x128xf32, #tpu.memory_space<vmem>>, vector<2x128xf32>,
    %cst_19 = arith.constant 0.000000e+00 : f32
    %32 = vector.broadcast %cst_19 : f32 to vector<2x120xf32>
    %33 = tpu.concatenate %21, %32 in 1 : vector<2x8xf32>, vector<2x120xf32> -> vector<2x128xf32>
    %c0_20 = arith.constant 0 : index
    %c0_21 = arith.constant 0 : index
    %34 = vector.load %arg8[%c0_20, %c0_21] : memref<2x128xf32, #tpu.memory_space<vmem>>, vector<2x128xf32>
    tpu.vector_store %arg8[%c0_20, %c0_21], %33 {strides = array<i32>} : memref<2x128xf32, #tpu.memory_space<vmem>>, vector<2x128xf32>,
    return
  }
  func.func @transform_0(%arg0: i32) -> (i32, i32, i32) {
    %c0_i32 = arith.constant 0 : i32
    %c0_i32_0 = arith.constant 0 : i32
    %c0_i32_1 = arith.constant 0 : i32
    return %arg0, %c0_i32, %c0_i32_0 : i32, i32, i32
  }
  func.func @transform_1(%arg0: i32) -> (i32, i32) {
    %c0_i32 = arith.constant 0 : i32
    %c0_i32_0 = arith.constant 0 : i32
    %c0_i32_1 = arith.constant 0 : i32
    return %c0_i32, %c0_i32_0 : i32, i32
  }
  func.func @transform_2(%arg0: i32) -> (i32, i32) {
    %c0_i32 = arith.constant 0 : i32
    %c0_i32_0 = arith.constant 0 : i32
    %c0_i32_1 = arith.constant 0 : i32
    return %c0_i32, %c0_i32_0 : i32, i32
  }
  func.func @transform_3(%arg0: i32) -> (i32, i32) {
    %c0_i32 = arith.constant 0 : i32
    %c0_i32_0 = arith.constant 0 : i32
    %c0_i32_1 = arith.constant 0 : i32
    return %c0_i32, %c0_i32_0 : i32, i32
  }
  func.func @transform_4(%arg0: i32) -> (i32, i32) {
    %c0_i32 = arith.constant 0 : i32
    %c0_i32_0 = arith.constant 0 : i32
    %c0_i32_1 = arith.constant 0 : i32
    return %c0_i32, %c0_i32_0 : i32, i32
  }
  func.func @transform_5(%arg0: i32) -> (i32, i32) {
    %c0_i32 = arith.constant 0 : i32
    %c0_i32_0 = arith.constant 0 : i32
    %c0_i32_1 = arith.constant 0 : i32
    return %c0_i32, %c0_i32_0 : i32, i32
  }
  func.func @transform_6(%arg0: i32) -> (i32, i32) {
    %c0_i32 = arith.constant 0 : i32
    %c0_i32_0 = arith.constant 0 : i32
    return %arg0, %c0_i32 : i32, i32
  }
  func.func @transform_7(%arg0: i32) -> (i32, i32) {
    %c0_i32 = arith.constant 0 : i32
    %c0_i32_0 = arith.constant 0 : i32
    return %arg0, %c0_i32 : i32, i32
  }
}

</mosaic_0001>

<llo_original>
// kernel: tpu_custom_call.1
$region0: #{tpu_custom_call.1}
  #allocation0 [shape = 'u32[]', space=smem, size = 0x4, offset = 0x4, fixed_abs, tag = 'smem constant byte address 0x4 - core index']
  #allocation1 [shape = 'u32[144,128]{1,0:T(1,128)}', space=vmem, size = 0x12000, scoped, tag = 'internal scratch']
  %s0 = inlined_call_operand.hbm [shape: f32[2,8,32], index: 0, kind: input, shape index: {}]
  %s1 = inlined_call_operand.vmem [shape: f32[1,32], index: 1, kind: input, shape index: {}]
  %s2 = inlined_call_operand.hbm [shape: f32[32,32], index: 2, kind: input, shape index: {}]
  %s3 = inlined_call_operand.vmem [shape: f32[1,32], index: 3, kind: input, shape index: {}]
  %s4 = inlined_call_operand.hbm [shape: f32[32,128], index: 4, kind: input, shape index: {}]
  %s5 = inlined_call_operand.vmem [shape: f32[1,128], index: 5, kind: input, shape index: {}]
  %s6 = inlined_call_operand.hbm [shape: f32[2,128], index: 6, kind: output, shape index: {0}]
  %s7 = inlined_call_operand.hbm [shape: f32[2,128], index: 7, kind: output, shape index: {1}]
  %8 = xla_tuple %s6, %s7
  %s9 = sld [smem:[#allocation0]]
  $region54: #{tpu_custom_call.1} parent=0
    _
  %s11 = ssub.s32 1, %s9
  %s12 = scalar_select 0, %s11, %s9
  $region1: #{tpu_custom_call.1} parent=0
    #allocation2 [shape = 'u8[8192]{0}', space=vmem, size = 0x2000, scoped, tag = 'input window, operand 0, single buffered']
    #allocation3 [shape = 's32[1]{0}', space=sflag, size = 0x4, scoped, tag = 'scoped memory for tpu_custom_call.1']
    #allocation4 [shape = 's32[1]{0}', space=sflag, size = 0x4, scoped, tag = 'scoped memory for tpu_custom_call.1']
    #allocation5 [shape = 'u8[16384]{0}', space=vmem, size = 0x4000, scoped, tag = 'input window, operand 2, single buffered']
    #allocation6 [shape = 's32[1]{0}', space=sflag, size = 0x4, scoped, tag = 'scoped memory for tpu_custom_call.1']
    #allocation7 [shape = 'u8[16384]{0}', space=vmem, size = 0x4000, scoped, tag = 'input window, operand 4, single buffered']
    #allocation8 [shape = 'u8[1024]{0}', space=vmem, size = 0x400, scoped, tag = 'output window, operand 0, single buffered']
    #allocation9 [shape = 'u8[1024]{0}', space=vmem, size = 0x400, scoped, tag = 'output window, operand 1, single buffered']
    #allocation10 [shape = 's32[1]{0}', space=sflag, size = 0x4, scoped, tag = 'scoped memory for tpu_custom_call.1']
    %13 = vsyncpa [#allocation3], 0
    %14 = vsyncpa [#allocation6], 0
    %15 = vsyncpa [#allocation4], 0
    %16 = vsyncpa [#allocation10], 0
    // Predicated region
    $region2: #{tpu_custom_call.1} parent=1 // pred_check
      _
    $region3: #{tpu_custom_call.1} parent=1 // pred_check_branch
      %18 = sbr.rel (0) target = $region5
    $region4: #{tpu_custom_call.1} parent=1 // pred_region
      %s20 = ssub.s32 256, 256
      %21 = vsyncadd [#allocation3], %s20
      %s22 = sshll.u32 [#allocation2], 4
      %s23 = int_to_ptr.vmem [resolvable:$true] %s22
      %28 = dma.hbm_to_vmem [thread:$0]  %s0, 256, %s23, [#allocation3], 128, 128, 8
    $region5: #{tpu_custom_call.1} parent=1 // pred_fallthru
      _
    // Predicated region
    $region6: #{tpu_custom_call.1} parent=1 // pred_check
      _
    $region7: #{tpu_custom_call.1} parent=1 // pred_check_branch
      %30 = sbr.rel (0) target = $region9
    $region8: #{tpu_custom_call.1} parent=1 // pred_region
      _
    $region9: #{tpu_custom_call.1} parent=1 // pred_fallthru
      _
    // Predicated region
    $region10: #{tpu_custom_call.1} parent=1 // pred_check
      _
    $region11: #{tpu_custom_call.1} parent=1 // pred_check_branch
      %32 = sbr.rel (0) target = $region13
    $region12: #{tpu_custom_call.1} parent=1 // pred_region
      %s34 = ssub.s32 512, 512
      %35 = vsyncadd [#allocation6], %s34
      %s36 = sshll.u32 [#allocation5], 4
      %s37 = int_to_ptr.vmem [resolvable:$true] %s36
      %42 = dma.hbm_to_vmem [thread:$0]  %s2, 512, %s37, [#allocation6], 128, 128, 8
    $region13: #{tpu_custom_call.1} parent=1 // pred_fallthru
      _
    // Predicated region
    $region14: #{tpu_custom_call.1} parent=1 // pred_check
      _
    $region15: #{tpu_custom_call.1} parent=1 // pred_check_branch
      %44 = sbr.rel (0) target = $region17
    $region16: #{tpu_custom_call.1} parent=1 // pred_region
      _
    $region17: #{tpu_custom_call.1} parent=1 // pred_fallthru
      _
    // Predicated region
    $region18: #{tpu_custom_call.1} parent=1 // pred_check
      _
    $region19: #{tpu_custom_call.1} parent=1 // pred_check_branch
      %46 = sbr.rel (0) target = $region21
    $region20: #{tpu_custom_call.1} parent=1 // pred_region
      %s48 = ssub.s32 512, 512
      %49 = vsyncadd [#allocation6], %s48
      %s50 = sshll.u32 [#allocation7], 4
      %s51 = int_to_ptr.vmem [resolvable:$true] %s50
      %56 = dma.hbm_to_vmem [thread:$0]  %s4, 512, %s51, [#allocation6], 128, 128, 8
    $region21: #{tpu_custom_call.1} parent=1 // pred_fallthru
      _
    // Predicated region
    $region22: #{tpu_custom_call.1} parent=1 // pred_check
      _
    $region23: #{tpu_custom_call.1} parent=1 // pred_check_branch
      %58 = sbr.rel (0) target = $region25
    $region24: #{tpu_custom_call.1} parent=1 // pred_region
      _
    $region25: #{tpu_custom_call.1} parent=1 // pred_fallthru
      _
    // Predicated region
    $region26: #{tpu_custom_call.1} parent=1 // pred_check
      _
    $region27: #{tpu_custom_call.1} parent=1 // pred_check_branch
      %60 = sbr.rel (0) target = $region29
    $region28: #{tpu_custom_call.1} parent=1 // pred_region
      %61 = dma.done [#allocation3], 256
    $region29: #{tpu_custom_call.1} parent=1 // pred_fallthru
      _
    // Predicated region
    $region30: #{tpu_custom_call.1} parent=1 // pred_check
      _
    $region31: #{tpu_custom_call.1} parent=1 // pred_check_branch
      %63 = sbr.rel (0) target = $region33
    $region32: #{tpu_custom_call.1} parent=1 // pred_region
      %64 = dma.done [#allocation6], 512
    $region33: #{tpu_custom_call.1} parent=1 // pred_fallthru
      _
    // Predicated region
    $region34: #{tpu_custom_call.1} parent=1 // pred_check
      _
    $region35: #{tpu_custom_call.1} parent=1 // pred_check_branch
      %66 = sbr.rel (0) target = $region37
    $region36: #{tpu_custom_call.1} parent=1 // pred_region
      %67 = dma.done [#allocation6], 512
    $region37: #{tpu_custom_call.1} parent=1 // pred_fallthru
      _
    %v68 = vld [vmem:[#allocation2] sm:$0xff]
    %v69 = vld [vmem:[#allocation2 + $0x8] sm:$0xff]
    %v70 = vld [vmem:[#allocation5] sm:$0xff]
    %v71 = vld [vmem:[#allocation5 + $0x8] sm:$0xff]
    %v72 = vld [vmem:[#allocation5 + $0x10] sm:$0xff]
    %v73 = vld [vmem:[#allocation5 + $0x18] sm:$0xff]
    %v74 = vld [vmem:[%s3] sm:$0x1]
    %v76 = vlaneseq
    %v77 = vshrl.u32 %v76, 7
    %v78 = vsub.s32 0, %v77
    %v79 = vrot.slane %v74, %v78
    %vm81 = vcmask 261120
    %v83 = vsel %vm81, %v68, 0
    %v86 = vsel %vm81, %v69, 0
    %88 = vmatprep.subr.mxu0 0.0
    %89 = vmatpush1.msra.mxu0 0.0
    %90 = vmatprep.subr.mxu0 0.0
    %91 = vmatpush1.msra.mxu0 0.0
    %92 = vmatprep.subr.mxu0 0.0
    %93 = vmatpush1.msra.mxu0 0.0
    %94 = vmatprep.subr.mxu0 0.0
    %95 = vmatpush1.msra.mxu0 0.0
    %96 = vmatprep.subr.mxu0 0.0
    %97 = vmatpush1.msra.mxu0 0.0
    %98 = vmatprep.subr.mxu0 0.0
    %99 = vmatpush1.msra.mxu0 0.0
    %100 = vmatprep.subr.mxu0 0.0
    %101 = vmatpush1.msra.mxu0 0.0
    %102 = vmatprep.subr.mxu0 0.0
    %103 = vmatpush1.msra.mxu0 0.0
    %104 = vmatprep.subr.mxu0 0.0
    %105 = vmatpush1.msra.mxu0 0.0
    %106 = vmatprep.subr.mxu0 0.0
    %107 = vmatpush1.msra.mxu0 0.0
    %108 = vmatprep.subr.mxu0 0.0
    %109 = vmatpush1.msra.mxu0 0.0
    %110 = vmatprep.subr.mxu0 0.0
    %111 = vmatpush1.msra.mxu0 0.0
    %112 = vmatprep.subr.mxu0 0.0
    %113 = vmatpush1.msra.mxu0 %v73
    %114 = vmatprep.subr.mxu0 0.0
    %115 = vmatpush1.msra.mxu0 %v72
    %116 = vmatprep.subr.mxu0 0.0
    %117 = vmatpush1.msra.mxu0 %v71
    %118 = vmatprep.subr.mxu0 0.0
    %119 = vmatpush1.msra.mxu0 %v70
    %120 = vmatprep.subr.mxu0 0.0
    %121 = vmatpush2.msra.mxu0 0.0
    %122 = vmatprep.subr.mxu0 0.0
    %123 = vmatpush2.msra.mxu0 0.0
    %124 = vmatprep.subr.mxu0 0.0
    %125 = vmatpush2.msra.mxu0 0.0
    %126 = vmatprep.subr.mxu0 0.0
    %127 = vmatpush2.msra.mxu0 0.0
    %128 = vmatprep.subr.mxu0 0.0
    %129 = vmatpush2.msra.mxu0 0.0
    %130 = vmatprep.subr.mxu0 0.0
    %131 = vmatpush2.msra.mxu0 0.0
    %132 = vmatprep.subr.mxu0 0.0
    %133 = vmatpush2.msra.mxu0 0.0
    %134 = vmatprep.subr.mxu0 0.0
    %135 = vmatpush2.msra.mxu0 0.0
    %136 = vmatprep.subr.mxu0 0.0
    %137 = vmatpush2.msra.mxu0 0.0
    %138 = vmatprep.subr.mxu0 0.0
    %139 = vmatpush2.msra.mxu0 0.0
    %140 = vmatprep.subr.mxu0 0.0
    %141 = vmatpush2.msra.mxu0 0.0
    %142 = vmatprep.subr.mxu0 0.0
    %143 = vmatpush2.msra.mxu0 0.0
    %144 = vmatprep.subr.mxu0 0.0
    %145 = vmatpush2.msra.mxu0 0.0
    %146 = vmatprep.subr.mxu0 0.0
    %147 = vmatpush2.msra.mxu0 0.0
    %148 = vmatprep.subr.mxu0 0.0
    %149 = vmatpush2.msra.mxu0 0.0
    %150 = vmatprep.subr.mxu0 0.0
    %151 = vmatpush2.msra.mxu0 0.0
    %152 = vmatprep.mubr.f32.mxu0 0.0
    %153 = vmatmul.mubr.f32.gmra.mxu0 %v83
    %v154 = vpop.f32.mrf.mxu0
    %v155 = vadd.f32 %v79, %v154
    %v156 = vpop.f32.mrf.mxu0
    %157 = vmatprep.mubr.f32.mxu0 0.0
    %158 = vmatmul.mubr.f32.gmra.mxu0 %v86
    %v159 = vpop.f32.mrf.mxu0
    %v160 = vadd.f32 %v79, %v159
    %v161 = vpop.f32.mrf.mxu0
    %162 = vdwg.mxu0
    %v163 = vld [vmem:[%s1] sm:$0x1]
    %v165 = vlaneseq
    %v166 = vshrl.u32 %v165, 7
    %v167 = vsub.s32 0, %v166
    %v168 = vrot.slane %v163, %v167
    %v170 = vmul.f32 %v155, %v168
    %v171 = vmul.f32 %v160, %v168
    %v172 = vsel %vm81, %v170, 0.0
    %173 = vadd.xlane.f32.xlu0 %v172
    %v174 = vpop.xlane.xlu0 %173
    %v175 = vsel %vm81, %v171, 0.0
    %176 = vadd.xlane.f32.xlu0 %v175
    %v177 = vpop.xlane.xlu0 %176
    %v180 = vlaneseq
    %v181 = vand.u32 %v180, 127
    %v182 = vlaneseq
    %v183 = vshrl.u32 %v182, 7
    %v184 = vsub.s32 %v181, %v183
    %v185 = vrot.slane %v174, %v184
    %v186 = vlaneseq
    %v187 = vshrl.u32 %v186, 7
    %v188 = vsub.s32 %v181, %v187
    %v189 = vrot.slane %v177, %v188
    %vm190 = vcmask 1041409
    %v191 = vsel %vm190, %v189, %v185
    %vm193 = vcmask 58368
    %v194 = vsel %vm193, %v191, -inf
    %195 = vmax.xlane.f32.xlu0 %v194
    %v196 = vpop.xlane.xlu0 %195
    %v198 = vlaneseq
    %v199 = vshrl.u32 %v198, 7
    %v200 = vsub.s32 0, %v199
    %v201 = vrot.slane %v196, %v200
    %v202 = vlaneseq
    %v203 = vshrl.u32 %v202, 7
    %v204 = vsub.s32 1, %v203
    %v205 = vrot.slane %v196, %v204
    %v208 = vsub.f32 %v174, %v201
    %v209 = vsub.f32 %v177, %v205
    %v210 = vmul.f32 %v208, 1.442695
    %v211 = vpow.pop %v210
    %v212 = vmul.f32 %v209, 1.442695
    %v213 = vpow.pop %v212
    %216 = vset.pattern.permute.xlu0 0
    %217 = vperm.xlu0 %216, %v211
    %v218 = vpop.permute.xlu0 %217
    %219 = vset.pattern.permute.xlu0 0
    %220 = vperm.xlu0 %219, %v213
    %v221 = vpop.permute.xlu0 %220
    %v222 = vlaneseq
    %v223 = vshrl.u32 %v222, 7
    %v224 = vsub.s32 %v181, %v223
    %v225 = vrot.slane %v218, %v224
    %v226 = vlaneseq
    %v227 = vshrl.u32 %v226, 7
    %v228 = vsub.s32 %v181, %v227
    %v229 = vrot.slane %v221, %v228
    %v230 = vsel %vm190, %v229, %v225
    %v232 = vsel %vm193, %v230, 0.0
    %233 = vadd.xlane.f32.xlu0 %v232
    %v234 = vpop.xlane.xlu0 %233
    %v236 = vlaneseq
    %v237 = vshrl.u32 %v236, 7
    %v238 = vsub.s32 0, %v237
    %v239 = vrot.slane %v234, %v238
    %v240 = vlaneseq
    %v241 = vshrl.u32 %v240, 7
    %v242 = vsub.s32 1, %v241
    %v243 = vrot.slane %v234, %v242
    %v246 = vrcp.pop %v239
    %v247 = vmul.f32 %v211, %v246
    %v248 = vrcp.pop %v243
    %v249 = vmul.f32 %v213, %v248
    %251 = vset.pattern.permute.xlu0 0
    %252 = vperm.xlu0 %251, %v247
    %v253 = vpop.permute.xlu0 %252
    %256 = vset.pattern.permute.xlu0 0
    %257 = vperm.xlu0 %256, %v249
    %v258 = vpop.permute.xlu0 %257
    %v260 = vmul.f32 %v253, %v155
    %v261 = vmul.f32 %v258, %v160
    %v262 = vsel %vm81, %v260, 0.0
    %v263 = vrot.slane %v262, 4
    %v264 = vadd.f32 %v262, %v263
    %v265 = vrot.slane %v264, 2
    %v266 = vadd.f32 %v264, %v265
    %v267 = vrot.slane %v266, 1
    %v268 = vadd.f32 %v266, %v267
    %v269 = vsel %vm81, %v261, 0.0
    %v270 = vrot.slane %v269, 4
    %v271 = vadd.f32 %v269, %v270
    %v272 = vrot.slane %v271, 2
    %v273 = vadd.f32 %v271, %v272
    %v274 = vrot.slane %v273, 1
    %v275 = vadd.f32 %v273, %v274
    %v276 = vld [vmem:[#allocation7] sm:$0xff]
    %v277 = vld [vmem:[#allocation7 + $0x8] sm:$0xff]
    %v278 = vld [vmem:[#allocation7 + $0x10] sm:$0xff]
    %v279 = vld [vmem:[#allocation7 + $0x18] sm:$0xff]
    %v280 = vld [vmem:[%s5] sm:$0x1]
    %v282 = vlaneseq
    %v283 = vshrl.u32 %v282, 7
    %v284 = vsub.s32 0, %v283
    %v285 = vrot.slane %v280, %v284
    %v289 = vsel %vm190, %v275, %v268
    %v290 = vsel %vm81, %v289, 0
    %292 = vmatprep.subr.mxu0 0.0
    %293 = vmatpush1.msra.mxu0 0.0
    %294 = vmatprep.subr.mxu0 0.0
    %295 = vmatpush1.msra.mxu0 0.0
    %296 = vmatprep.subr.mxu0 0.0
    %297 = vmatpush1.msra.mxu0 0.0
    %298 = vmatprep.subr.mxu0 0.0
    %299 = vmatpush1.msra.mxu0 0.0
    %300 = vmatprep.subr.mxu0 0.0
    %301 = vmatpush1.msra.mxu0 0.0
    %302 = vmatprep.subr.mxu0 0.0
    %303 = vmatpush1.msra.mxu0 0.0
    %304 = vmatprep.subr.mxu0 0.0
    %305 = vmatpush1.msra.mxu0 0.0
    %306 = vmatprep.subr.mxu0 0.0
    %307 = vmatpush1.msra.mxu0 0.0
    %308 = vmatprep.subr.mxu0 0.0
    %309 = vmatpush1.msra.mxu0 0.0
    %310 = vmatprep.subr.mxu0 0.0
    %311 = vmatpush1.msra.mxu0 0.0
    %312 = vmatprep.subr.mxu0 0.0
    %313 = vmatpush1.msra.mxu0 0.0
    %314 = vmatprep.subr.mxu0 0.0
    %315 = vmatpush1.msra.mxu0 0.0
    %316 = vmatprep.subr.mxu0 0.0
    %317 = vmatpush1.msra.mxu0 %v279
    %318 = vmatprep.subr.mxu0 0.0
    %319 = vmatpush1.msra.mxu0 %v278
    %320 = vmatprep.subr.mxu0 0.0
    %321 = vmatpush1.msra.mxu0 %v277
    %322 = vmatprep.subr.mxu0 0.0
    %323 = vmatpush1.msra.mxu0 %v276
    %324 = vmatprep.subr.mxu0 0.0
    %325 = vmatpush2.msra.mxu0 0.0
    %326 = vmatprep.subr.mxu0 0.0
    %327 = vmatpush2.msra.mxu0 0.0
    %328 = vmatprep.subr.mxu0 0.0
    %329 = vmatpush2.msra.mxu0 0.0
    %330 = vmatprep.subr.mxu0 0.0
    %331 = vmatpush2.msra.mxu0 0.0
    %332 = vmatprep.subr.mxu0 0.0
    %333 = vmatpush2.msra.mxu0 0.0
    %334 = vmatprep.subr.mxu0 0.0
    %335 = vmatpush2.msra.mxu0 0.0
    %336 = vmatprep.subr.mxu0 0.0
    %337 = vmatpush2.msra.mxu0 0.0
    %338 = vmatprep.subr.mxu0 0.0
    %339 = vmatpush2.msra.mxu0 0.0
    %340 = vmatprep.subr.mxu0 0.0
    %341 = vmatpush2.msra.mxu0 0.0
    %342 = vmatprep.subr.mxu0 0.0
    %343 = vmatpush2.msra.mxu0 0.0
    %344 = vmatprep.subr.mxu0 0.0
    %345 = vmatpush2.msra.mxu0 0.0
    %346 = vmatprep.subr.mxu0 0.0
    %347 = vmatpush2.msra.mxu0 0.0
    %348 = vmatprep.subr.mxu0 0.0
    %349 = vmatpush2.msra.mxu0 0.0
    %350 = vmatprep.subr.mxu0 0.0
    %351 = vmatpush2.msra.mxu0 0.0
    %352 = vmatprep.subr.mxu0 0.0
    %353 = vmatpush2.msra.mxu0 0.0
    %354 = vmatprep.subr.mxu0 0.0
    %355 = vmatpush2.msra.mxu0 0.0
    %356 = vmatprep.mubr.f32.mxu0 0.0
    %357 = vmatmul.mubr.f32.gmra.mxu0 %v290
    %v358 = vpop.f32.mrf.mxu0
    %v359 = vadd.f32 %v285, %v358
    %v360 = vpop.f32.mrf.mxu0
    %361 = vdwg.mxu0
    %362 = vst [vmem:[#allocation8] sm:$0x3] %v359
    %v363 = vlaneseq
    %v364 = vshrl.u32 %v363, 7
    %v365 = vsub.s32 %v181, %v364
    %v366 = vrot.slane %v253, %v365
    %v367 = vlaneseq
    %v368 = vshrl.u32 %v367, 7
    %v369 = vsub.s32 %v181, %v368
    %v370 = vrot.slane %v258, %v369
    %v371 = vsel %vm190, %v370, %v366
    %vm373 = vcmask 64512
    %v374 = vsel %vm373, %v371, 0.0
    %375 = vst [vmem:[#allocation9] sm:$0x3] %v374
    // Predicated region
    $region38: #{tpu_custom_call.1} parent=1 // pred_check
      _
    $region39: #{tpu_custom_call.1} parent=1 // pred_check_branch
      %377 = sbr.rel (0) target = $region41
    $region40: #{tpu_custom_call.1} parent=1 // pred_region
      %s379 = ssub.s32 32, 32
      %380 = vsyncadd [#allocation4], %s379
      %s382 = sshll.u32 [#allocation8], 4
      %s383 = int_to_ptr.vmem [resolvable:$true] %s382
      %385 = dma.vmem_to_hbm [thread:$0]  %s383, 32, %s6, [#allocation4]
    $region41: #{tpu_custom_call.1} parent=1 // pred_fallthru
      _
    // Predicated region
    $region42: #{tpu_custom_call.1} parent=1 // pred_check
      _
    $region43: #{tpu_custom_call.1} parent=1 // pred_check_branch
      %387 = sbr.rel (0) target = $region45
    $region44: #{tpu_custom_call.1} parent=1 // pred_region
      %s389 = ssub.s32 32, 32
      %390 = vsyncadd [#allocation10], %s389
      %s392 = sshll.u32 [#allocation9], 4
      %s393 = int_to_ptr.vmem [resolvable:$true] %s392
      %395 = dma.vmem_to_hbm [thread:$0]  %s393, 32, %s7, [#allocation10]
    $region45: #{tpu_custom_call.1} parent=1 // pred_fallthru
      _
    // Predicated region
    $region46: #{tpu_custom_call.1} parent=1 // pred_check
      _
    $region47: #{tpu_custom_call.1} parent=1 // pred_check_branch
      %397 = sbr.rel (0) target = $region49
    $region48: #{tpu_custom_call.1} parent=1 // pred_region
      %398 = dma.done [#allocation4], 32
    $region49: #{tpu_custom_call.1} parent=1 // pred_fallthru
      _
    // Predicated region
    $region50: #{tpu_custom_call.1} parent=1 // pred_check
      _
    $region51: #{tpu_custom_call.1} parent=1 // pred_check_branch
      %400 = sbr.rel (0) target = $region53
    $region52: #{tpu_custom_call.1} parent=1 // pred_region
      %401 = dma.done [#allocation10], 32
    $region53: #{tpu_custom_call.1} parent=1 // pred_fallthru
      _
    %402 = vsyncpa [#allocation3], 1
    %403 = vsyncpa [#allocation6], 1
    %404 = vsyncpa [#allocation4], 1
    %405 = vsyncpa [#allocation10], 1

// kernel: tpu_custom_call.1
$region0: #{tpu_custom_call.1}
  #allocation0 [shape = 'u32[]', space=smem, size = 0x4, offset = 0x4, fixed_abs, tag = 'smem constant byte address 0x4 - core index']
  #allocation1 [shape = 'u32[144,128]{1,0:T(1,128)}', space=vmem, size = 0x12000, scoped, tag = 'internal scratch']
  %s0 = inlined_call_operand.hbm [shape: f32[2,8,32], index: 0, kind: input, shape index: {}]
  %s1 = inlined_call_operand.vmem [shape: f32[1,32], index: 1, kind: input, shape index: {}]
  %s2 = inlined_call_operand.hbm [shape: f32[32,32], index: 2, kind: input, shape index: {}]
  %s3 = inlined_call_operand.vmem [shape: f32[1,32], index: 3, kind: input, shape index: {}]
  %s4 = inlined_call_operand.hbm [shape: f32[32,128], index: 4, kind: input, shape index: {}]
  %s5 = inlined_call_operand.vmem [shape: f32[1,128], index: 5, kind: input, shape index: {}]
  %s6 = inlined_call_operand.hbm [shape: f32[2,128], index: 6, kind: output, shape index: {0}]
  %s7 = inlined_call_operand.hbm [shape: f32[2,128], index: 7, kind: output, shape index: {1}]
  %8 = xla_tuple %s6, %s7
  %s9 = sld [smem:[#allocation0]]
  $region54: #{tpu_custom_call.1} parent=0
    _
  %s11 = ssub.s32 1, %s9
  %s12 = scalar_select 0, %s11, %s9
  $region1: #{tpu_custom_call.1} parent=0
    #allocation2 [shape = 'u8[8192]{0}', space=vmem, size = 0x2000, scoped, tag = 'input window, operand 0, single buffered']
    #allocation3 [shape = 's32[1]{0}', space=sflag, size = 0x4, scoped, tag = 'scoped memory for tpu_custom_call.1']
    #allocation4 [shape = 's32[1]{0}', space=sflag, size = 0x4, scoped, tag = 'scoped memory for tpu_custom_call.1']
    #allocation5 [shape = 'u8[16384]{0}', space=vmem, size = 0x4000, scoped, tag = 'input window, operand 2, single buffered']
    #allocation6 [shape = 's32[1]{0}', space=sflag, size = 0x4, scoped, tag = 'scoped memory for tpu_custom_call.1']
    #allocation7 [shape = 'u8[16384]{0}', space=vmem, size = 0x4000, scoped, tag = 'input window, operand 4, single buffered']
    #allocation8 [shape = 'u8[1024]{0}', space=vmem, size = 0x400, scoped, tag = 'output window, operand 0, single buffered']
    #allocation9 [shape = 'u8[1024]{0}', space=vmem, size = 0x400, scoped, tag = 'output window, operand 1, single buffered']
    #allocation10 [shape = 's32[1]{0}', space=sflag, size = 0x4, scoped, tag = 'scoped memory for tpu_custom_call.1']
    %13 = vsyncpa [#allocation3], 0
    %14 = vsyncpa [#allocation6], 0
    %15 = vsyncpa [#allocation4], 0
    %16 = vsyncpa [#allocation10], 0
    // Predicated region
    $region2: #{tpu_custom_call.1} parent=1 // pred_check
      _
    $region3: #{tpu_custom_call.1} parent=1 // pred_check_branch
      %18 = sbr.rel (0) target = $region5
    $region4: #{tpu_custom_call.1} parent=1 // pred_region
      %s20 = ssub.s32 256, 256
      %21 = vsyncadd [#allocation3], %s20
      %s22 = sshll.u32 [#allocation2], 4
      %s23 = int_to_ptr.vmem [resolvable:$true] %s22
      %28 = dma.hbm_to_vmem [thread:$0]  %s0, 256, %s23, [#allocation3], 128, 128, 8
    $region5: #{tpu_custom_call.1} parent=1 // pred_fallthru
      _
    // Predicated region
    $region6: #{tpu_custom_call.1} parent=1 // pred_check
      _
    $region7: #{tpu_custom_call.1} parent=1 // pred_check_branch
      %30 = sbr.rel (0) target = $region9
    $region8: #{tpu_custom_call.1} parent=1 // pred_region
      _
    $region9: #{tpu_custom_call.1} parent=1 // pred_fallthru
      _
    // Predicated region
    $region10: #{tpu_custom_call.1} parent=1 // pred_check
      _
    $region11: #{tpu_custom_call.1} parent=1 // pred_check_branch
      %32 = sbr.rel (0) target = $region13
    $region12: #{tpu_custom_call.1} parent=1 // pred_region
      %s34 = ssub.s32 512, 512
      %35 = vsyncadd [#allocation6], %s34
      %s36 = sshll.u32 [#allocation5], 4
      %s37 = int_to_ptr.vmem [resolvable:$true] %s36
      %42 = dma.hbm_to_vmem [thread:$0]  %s2, 512, %s37, [#allocation6], 128, 128, 8
    $region13: #{tpu_custom_call.1} parent=1 // pred_fallthru
      _
    // Predicated region
    $region14: #{tpu_custom_call.1} parent=1 // pred_check
      _
    $region15: #{tpu_custom_call.1} parent=1 // pred_check_branch
      %44 = sbr.rel (0) target = $region17
    $region16: #{tpu_custom_call.1} parent=1 // pred_region
      _
    $region17: #{tpu_custom_call.1} parent=1 // pred_fallthru
      _
    // Predicated region
    $region18: #{tpu_custom_call.1} parent=1 // pred_check
      _
    $region19: #{tpu_custom_call.1} parent=1 // pred_check_branch
      %46 = sbr.rel (0) target = $region21
    $region20: #{tpu_custom_call.1} parent=1 // pred_region
      %s48 = ssub.s32 512, 512
      %49 = vsyncadd [#allocation6], %s48
      %s50 = sshll.u32 [#allocation7], 4
      %s51 = int_to_ptr.vmem [resolvable:$true] %s50
      %56 = dma.hbm_to_vmem [thread:$0]  %s4, 512, %s51, [#allocation6], 128, 128, 8
    $region21: #{tpu_custom_call.1} parent=1 // pred_fallthru
      _
    // Predicated region
    $region22: #{tpu_custom_call.1} parent=1 // pred_check
      _
    $region23: #{tpu_custom_call.1} parent=1 // pred_check_branch
      %58 = sbr.rel (0) target = $region25
    $region24: #{tpu_custom_call.1} parent=1 // pred_region
      _
    $region25: #{tpu_custom_call.1} parent=1 // pred_fallthru
      _
    // Predicated region
    $region26: #{tpu_custom_call.1} parent=1 // pred_check
      _
    $region27: #{tpu_custom_call.1} parent=1 // pred_check_branch
      %60 = sbr.rel (0) target = $region29
    $region28: #{tpu_custom_call.1} parent=1 // pred_region
      %61 = dma.done [#allocation3], 256
    $region29: #{tpu_custom_call.1} parent=1 // pred_fallthru
      _
    // Predicated region
    $region30: #{tpu_custom_call.1} parent=1 // pred_check
      _
    $region31: #{tpu_custom_call.1} parent=1 // pred_check_branch
      %63 = sbr.rel (0) target = $region33
    $region32: #{tpu_custom_call.1} parent=1 // pred_region
      %64 = dma.done [#allocation6], 512
    $region33: #{tpu_custom_call.1} parent=1 // pred_fallthru
      _
    // Predicated region
    $region34: #{tpu_custom_call.1} parent=1 // pred_check
      _
    $region35: #{tpu_custom_call.1} parent=1 // pred_check_branch
      %66 = sbr.rel (0) target = $region37
    $region36: #{tpu_custom_call.1} parent=1 // pred_region
      %67 = dma.done [#allocation6], 512
    $region37: #{tpu_custom_call.1} parent=1 // pred_fallthru
      _
    %v68 = vld [vmem:[#allocation2] sm:$0xff]
    %v69 = vld [vmem:[#allocation2 + $0x8] sm:$0xff]
    %v70 = vld [vmem:[#allocation5] sm:$0xff]
    %v71 = vld [vmem:[#allocation5 + $0x8] sm:$0xff]
    %v72 = vld [vmem:[#allocation5 + $0x10] sm:$0xff]
    %v73 = vld [vmem:[#allocation5 + $0x18] sm:$0xff]
    %v74 = vld [vmem:[%s3] sm:$0x1]
    %v76 = vlaneseq
    %v77 = vshrl.u32 %v76, 7
    %v78 = vsub.s32 0, %v77
    %v79 = vrot.slane %v74, %v78
    %vm81 = vcmask 261120
    %v83 = vsel %vm81, %v68, 0
    %v86 = vsel %vm81, %v69, 0
    %88 = vmatprep.subr.mxu0 0.0
    %89 = vmatpush1.msra.mxu0 0.0
    %90 = vmatprep.subr.mxu0 0.0
    %91 = vmatpush1.msra.mxu0 0.0
    %92 = vmatprep.subr.mxu0 0.0
    %93 = vmatpush1.msra.mxu0 0.0
    %94 = vmatprep.subr.mxu0 0.0
    %95 = vmatpush1.msra.mxu0 0.0
    %96 = vmatprep.subr.mxu0 0.0
    %97 = vmatpush1.msra.mxu0 0.0
    %98 = vmatprep.subr.mxu0 0.0
    %99 = vmatpush1.msra.mxu0 0.0
    %100 = vmatprep.subr.mxu0 0.0
    %101 = vmatpush1.msra.mxu0 0.0
    %102 = vmatprep.subr.mxu0 0.0
    %103 = vmatpush1.msra.mxu0 0.0
    %104 = vmatprep.subr.mxu0 0.0
    %105 = vmatpush1.msra.mxu0 0.0
    %106 = vmatprep.subr.mxu0 0.0
    %107 = vmatpush1.msra.mxu0 0.0
    %108 = vmatprep.subr.mxu0 0.0
    %109 = vmatpush1.msra.mxu0 0.0
    %110 = vmatprep.subr.mxu0 0.0
    %111 = vmatpush1.msra.mxu0 0.0
    %112 = vmatprep.subr.mxu0 0.0
    %113 = vmatpush1.msra.mxu0 %v73
    %114 = vmatprep.subr.mxu0 0.0
    %115 = vmatpush1.msra.mxu0 %v72
    %116 = vmatprep.subr.mxu0 0.0
    %117 = vmatpush1.msra.mxu0 %v71
    %118 = vmatprep.subr.mxu0 0.0
    %119 = vmatpush1.msra.mxu0 %v70
    %120 = vmatprep.subr.mxu0 0.0
    %121 = vmatpush2.msra.mxu0 0.0
    %122 = vmatprep.subr.mxu0 0.0
    %123 = vmatpush2.msra.mxu0 0.0
    %124 = vmatprep.subr.mxu0 0.0
    %125 = vmatpush2.msra.mxu0 0.0
    %126 = vmatprep.subr.mxu0 0.0
    %127 = vmatpush2.msra.mxu0 0.0
    %128 = vmatprep.subr.mxu0 0.0
    %129 = vmatpush2.msra.mxu0 0.0
    %130 = vmatprep.subr.mxu0 0.0
    %131 = vmatpush2.msra.mxu0 0.0
    %132 = vmatprep.subr.mxu0 0.0
    %133 = vmatpush2.msra.mxu0 0.0
    %134 = vmatprep.subr.mxu0 0.0
    %135 = vmatpush2.msra.mxu0 0.0
    %136 = vmatprep.subr.mxu0 0.0
    %137 = vmatpush2.msra.mxu0 0.0
    %138 = vmatprep.subr.mxu0 0.0
    %139 = vmatpush2.msra.mxu0 0.0
    %140 = vmatprep.subr.mxu0 0.0
    %141 = vmatpush2.msra.mxu0 0.0
    %142 = vmatprep.subr.mxu0 0.0
    %143 = vmatpush2.msra.mxu0 0.0
    %144 = vmatprep.subr.mxu0 0.0
    %145 = vmatpush2.msra.mxu0 0.0
    %146 = vmatprep.subr.mxu0 0.0
    %147 = vmatpush2.msra.mxu0 0.0
    %148 = vmatprep.subr.mxu0 0.0
    %149 = vmatpush2.msra.mxu0 0.0
    %150 = vmatprep.subr.mxu0 0.0
    %151 = vmatpush2.msra.mxu0 0.0
    %152 = vmatprep.mubr.f32.mxu0 0.0
    %153 = vmatmul.mubr.f32.gmra.mxu0 %v83
    %v154 = vpop.f32.mrf.mxu0
    %v155 = vadd.f32 %v79, %v154
    %v156 = vpop.f32.mrf.mxu0
    %157 = vmatprep.mubr.f32.mxu0 0.0
    %158 = vmatmul.mubr.f32.gmra.mxu0 %v86
    %v159 = vpop.f32.mrf.mxu0
    %v160 = vadd.f32 %v79, %v159
    %v161 = vpop.f32.mrf.mxu0
    %162 = vdwg.mxu0
    %v163 = vld [vmem:[%s1] sm:$0x1]
    %v165 = vlaneseq
    %v166 = vshrl.u32 %v165, 7
    %v167 = vsub.s32 0, %v166
    %v168 = vrot.slane %v163, %v167
    %v170 = vmul.f32 %v155, %v168
    %v171 = vmul.f32 %v160, %v168
    %v172 = vsel %vm81, %v170, 0.0
    %173 = vadd.xlane.f32.xlu0 %v172
    %v174 = vpop.xlane.xlu0 %173
    %v175 = vsel %vm81, %v171, 0.0
    %176 = vadd.xlane.f32.xlu0 %v175
    %v177 = vpop.xlane.xlu0 %176
    %v180 = vlaneseq
    %v181 = vand.u32 %v180, 127
    %v182 = vlaneseq
    %v183 = vshrl.u32 %v182, 7
    %v184 = vsub.s32 %v181, %v183
    %v185 = vrot.slane %v174, %v184
    %v186 = vlaneseq
    %v187 = vshrl.u32 %v186, 7
    %v188 = vsub.s32 %v181, %v187
    %v189 = vrot.slane %v177, %v188
    %vm190 = vcmask 1041409
    %v191 = vsel %vm190, %v189, %v185
    %vm193 = vcmask 58368
    %v194 = vsel %vm193, %v191, -inf
    %195 = vmax.xlane.f32.xlu0 %v194
    %v196 = vpop.xlane.xlu0 %195
    %v198 = vlaneseq
    %v199 = vshrl.u32 %v198, 7
    %v200 = vsub.s32 0, %v199
    %v201 = vrot.slane %v196, %v200
    %v202 = vlaneseq
    %v203 = vshrl.u32 %v202, 7
    %v204 = vsub.s32 1, %v203
    %v205 = vrot.slane %v196, %v204
    %v208 = vsub.f32 %v174, %v201
    %v209 = vsub.f32 %v177, %v205
    %v210 = vmul.f32 %v208, 1.442695
    %v211 = vpow.pop %v210
    %v212 = vmul.f32 %v209, 1.442695
    %v213 = vpow.pop %v212
    %216 = vset.pattern.permute.xlu0 0
    %217 = vperm.xlu0 %216, %v211
    %v218 = vpop.permute.xlu0 %217
    %219 = vset.pattern.permute.xlu0 0
    %220 = vperm.xlu0 %219, %v213
    %v221 = vpop.permute.xlu0 %220
    %v222 = vlaneseq
    %v223 = vshrl.u32 %v222, 7
    %v224 = vsub.s32 %v181, %v223
    %v225 = vrot.slane %v218, %v224
    %v226 = vlaneseq
    %v227 = vshrl.u32 %v226, 7
    %v228 = vsub.s32 %v181, %v227
    %v229 = vrot.slane %v221, %v228
    %v230 = vsel %vm190, %v229, %v225
    %v232 = vsel %vm193, %v230, 0.0
    %233 = vadd.xlane.f32.xlu0 %v232
    %v234 = vpop.xlane.xlu0 %233
    %v236 = vlaneseq
    %v237 = vshrl.u32 %v236, 7
    %v238 = vsub.s32 0, %v237
    %v239 = vrot.slane %v234, %v238
    %v240 = vlaneseq
    %v241 = vshrl.u32 %v240, 7
    %v242 = vsub.s32 1, %v241
    %v243 = vrot.slane %v234, %v242
    %v246 = vrcp.pop %v239
    %v247 = vmul.f32 %v211, %v246
    %v248 = vrcp.pop %v243
    %v249 = vmul.f32 %v213, %v248
    %251 = vset.pattern.permute.xlu0 0
    %252 = vperm.xlu0 %251, %v247
    %v253 = vpop.permute.xlu0 %252
    %256 = vset.pattern.permute.xlu0 0
    %257 = vperm.xlu0 %256, %v249
    %v258 = vpop.permute.xlu0 %257
    %v260 = vmul.f32 %v253, %v155
    %v261 = vmul.f32 %v258, %v160
    %v262 = vsel %vm81, %v260, 0.0
    %v263 = vrot.slane %v262, 4
    %v264 = vadd.f32 %v262, %v263
    %v265 = vrot.slane %v264, 2
    %v266 = vadd.f32 %v264, %v265
    %v267 = vrot.slane %v266, 1
    %v268 = vadd.f32 %v266, %v267
    %v269 = vsel %vm81, %v261, 0.0
    %v270 = vrot.slane %v269, 4
    %v271 = vadd.f32 %v269, %v270
    %v272 = vrot.slane %v271, 2
    %v273 = vadd.f32 %v271, %v272
    %v274 = vrot.slane %v273, 1
    %v275 = vadd.f32 %v273, %v274
    %v276 = vld [vmem:[#allocation7] sm:$0xff]
    %v277 = vld [vmem:[#allocation7 + $0x8] sm:$0xff]
    %v278 = vld [vmem:[#allocation7 + $0x10] sm:$0xff]
    %v279 = vld [vmem:[#allocation7 + $0x18] sm:$0xff]
    %v280 = vld [vmem:[%s5] sm:$0x1]
    %v282 = vlaneseq
    %v283 = vshrl.u32 %v282, 7
    %v284 = vsub.s32 0, %v283
    %v285 = vrot.slane %v280, %v284
    %v289 = vsel %vm190, %v275, %v268
    %v290 = vsel %vm81, %v289, 0
    %292 = vmatprep.subr.mxu0 0.0
    %293 = vmatpush1.msra.mxu0 0.0
    %294 = vmatprep.subr.mxu0 0.0
    %295 = vmatpush1.msra.mxu0 0.0
    %296 = vmatprep.subr.mxu0 0.0
    %297 = vmatpush1.msra.mxu0 0.0
    %298 = vmatprep.subr.mxu0 0.0
    %299 = vmatpush1.msra.mxu0 0.0
    %300 = vmatprep.subr.mxu0 0.0
    %301 = vmatpush1.msra.mxu0 0.0
    %302 = vmatprep.subr.mxu0 0.0
    %303 = vmatpush1.msra.mxu0 0.0
    %304 = vmatprep.subr.mxu0 0.0
    %305 = vmatpush1.msra.mxu0 0.0
    %306 = vmatprep.subr.mxu0 0.0
    %307 = vmatpush1.msra.mxu0 0.0
    %308 = vmatprep.subr.mxu0 0.0
    %309 = vmatpush1.msra.mxu0 0.0
    %310 = vmatprep.subr.mxu0 0.0
    %311 = vmatpush1.msra.mxu0 0.0
    %312 = vmatprep.subr.mxu0 0.0
    %313 = vmatpush1.msra.mxu0 0.0
    %314 = vmatprep.subr.mxu0 0.0
    %315 = vmatpush1.msra.mxu0 0.0
    %316 = vmatprep.subr.mxu0 0.0
    %317 = vmatpush1.msra.mxu0 %v279
    %318 = vmatprep.subr.mxu0 0.0
    %319 = vmatpush1.msra.mxu0 %v278
    %320 = vmatprep.subr.mxu0 0.0
    %321 = vmatpush1.msra.mxu0 %v277
    %322 = vmatprep.subr.mxu0 0.0
    %323 = vmatpush1.msra.mxu0 %v276
    %324 = vmatprep.subr.mxu0 0.0
    %325 = vmatpush2.msra.mxu0 0.0
    %326 = vmatprep.subr.mxu0 0.0
    %327 = vmatpush2.msra.mxu0 0.0
    %328 = vmatprep.subr.mxu0 0.0
    %329 = vmatpush2.msra.mxu0 0.0
    %330 = vmatprep.subr.mxu0 0.0
    %331 = vmatpush2.msra.mxu0 0.0
    %332 = vmatprep.subr.mxu0 0.0
    %333 = vmatpush2.msra.mxu0 0.0
    %334 = vmatprep.subr.mxu0 0.0
    %335 = vmatpush2.msra.mxu0 0.0
    %336 = vmatprep.subr.mxu0 0.0
    %337 = vmatpush2.msra.mxu0 0.0
    %338 = vmatprep.subr.mxu0 0.0
    %339 = vmatpush2.msra.mxu0 0.0
    %340 = vmatprep.subr.mxu0 0.0
    %341 = vmatpush2.msra.mxu0 0.0
    %342 = vmatprep.subr.mxu0 0.0
    %343 = vmatpush2.msra.mxu0 0.0
    %344 = vmatprep.subr.mxu0 0.0
    %345 = vmatpush2.msra.mxu0 0.0
    %346 = vmatprep.subr.mxu0 0.0
    %347 = vmatpush2.msra.mxu0 0.0
    %348 = vmatprep.subr.mxu0 0.0
    %349 = vmatpush2.msra.mxu0 0.0
    %350 = vmatprep.subr.mxu0 0.0
    %351 = vmatpush2.msra.mxu0 0.0
    %352 = vmatprep.subr.mxu0 0.0
    %353 = vmatpush2.msra.mxu0 0.0
    %354 = vmatprep.subr.mxu0 0.0
    %355 = vmatpush2.msra.mxu0 0.0
    %356 = vmatprep.mubr.f32.mxu0 0.0
    %357 = vmatmul.mubr.f32.gmra.mxu0 %v290
    %v358 = vpop.f32.mrf.mxu0
    %v359 = vadd.f32 %v285, %v358
    %v360 = vpop.f32.mrf.mxu0
    %361 = vdwg.mxu0
    %362 = vst [vmem:[#allocation8] sm:$0x3] %v359
    %v363 = vlaneseq
    %v364 = vshrl.u32 %v363, 7
    %v365 = vsub.s32 %v181, %v364
    %v366 = vrot.slane %v253, %v365
    %v367 = vlaneseq
    %v368 = vshrl.u32 %v367, 7
    %v369 = vsub.s32 %v181, %v368
    %v370 = vrot.slane %v258, %v369
    %v371 = vsel %vm190, %v370, %v366
    %vm373 = vcmask 64512
    %v374 = vsel %vm373, %v371, 0.0
    %375 = vst [vmem:[#allocation9] sm:$0x3] %v374
    // Predicated region
    $region38: #{tpu_custom_call.1} parent=1 // pred_check
      _
    $region39: #{tpu_custom_call.1} parent=1 // pred_check_branch
      %377 = sbr.rel (0) target = $region41
    $region40: #{tpu_custom_call.1} parent=1 // pred_region
      %s379 = ssub.s32 32, 32
      %380 = vsyncadd [#allocation4], %s379
      %s382 = sshll.u32 [#allocation8], 4
      %s383 = int_to_ptr.vmem [resolvable:$true] %s382
      %385 = dma.vmem_to_hbm [thread:$0]  %s383, 32, %s6, [#allocation4]
    $region41: #{tpu_custom_call.1} parent=1 // pred_fallthru
      _
    // Predicated region
    $region42: #{tpu_custom_call.1} parent=1 // pred_check
      _
    $region43: #{tpu_custom_call.1} parent=1 // pred_check_branch
      %387 = sbr.rel (0) target = $region45
    $region44: #{tpu_custom_call.1} parent=1 // pred_region
      %s389 = ssub.s32 32, 32
      %390 = vsyncadd [#allocation10], %s389
      %s392 = sshll.u32 [#allocation9], 4
      %s393 = int_to_ptr.vmem [resolvable:$true] %s392
      %395 = dma.vmem_to_hbm [thread:$0]  %s393, 32, %s7, [#allocation10]
    $region45: #{tpu_custom_call.1} parent=1 // pred_fallthru
      _
    // Predicated region
    $region46: #{tpu_custom_call.1} parent=1 // pred_check
      _
    $region47: #{tpu_custom_call.1} parent=1 // pred_check_branch
      %397 = sbr.rel (0) target = $region49
    $region48: #{tpu_custom_call.1} parent=1 // pred_region
      %398 = dma.done [#allocation4], 32
    $region49: #{tpu_custom_call.1} parent=1 // pred_fallthru
      _
    // Predicated region
    $region50: #{tpu_custom_call.1} parent=1 // pred_check
      _
    $region51: #{tpu_custom_call.1} parent=1 // pred_check_branch
      %400 = sbr.rel (0) target = $region53
    $region52: #{tpu_custom_call.1} parent=1 // pred_region
      %401 = dma.done [#allocation10], 32
    $region53: #{tpu_custom_call.1} parent=1 // pred_fallthru
      _
    %402 = vsyncpa [#allocation3], 1
    %403 = vsyncpa [#allocation6], 1
    %404 = vsyncpa [#allocation4], 1
    %405 = vsyncpa [#allocation10], 1

</llo_original>
